<compile_context>
chip_gen: v5e
topology: v5e:2x2
jax: 0.10.0
libtpu: 0.0.40
codegen_flags: <defaults>
</compile_context>

<pallas_src>
import jax
import jax.numpy as jnp
from jax.experimental import pallas as pl
from jax.experimental.pallas import tpu as pltpu


def _tanh_kernel(x_ref, o_ref):
    x = x_ref[...]
    if x.dtype in (jnp.float32, jnp.bfloat16):
        # Native EUP tanh; memory-bound op, casts would only add VPU filler.
        o_ref[...] = jnp.tanh(x)
    else:
        o_ref[...] = jnp.tanh(x.astype(jnp.float32)).astype(o_ref.dtype)


def _pick_lane_width(n, max_width=2048):
    """Largest multiple of 128 that divides n (up to max_width), else 0."""
    best = 0
    c = 128
    while c <= max_width:
        if n % c == 0:
            best = c
        c += 128
    return best


def simple_tanh(x, *, target_block_bytes=4 * 1024 * 1024):
    """Elementwise tanh over an arbitrarily-shaped array via a Pallas kernel."""
    orig_shape = x.shape
    dtype = x.dtype
    N = x.size
    if N == 0:
        return x

    itemsize = jnp.dtype(dtype).itemsize
    # Sublane multiple for the packed dtype: 8 (f32), 16 (bf16/f16), 32 (int8/fp8).
    sub = max(8, (4 // itemsize) * 8)

    flat = x.reshape(-1)

    # Fast path: pick a lane-dense width that divides N exactly -> no padding,
    # no final slice.  Fall back to minimal padding (< 1024 elems) otherwise.
    C = _pick_lane_width(N)
    padded = False
    if C == 0:
        C = 1024
        total = pl.cdiv(N, C) * C
        flat = jnp.pad(flat, (0, total - N))
        padded = True

    R = flat.size // C
    x2 = flat.reshape(R, C)

    # Rows per block targeting ~target_block_bytes per buffer, aligned to the
    # sublane multiple; partial final block handled by Pallas (no row padding).
    max_rows = max(sub, (target_block_bytes // (C * itemsize)) // sub * sub)
    row_tile = min(max_rows, ((R + sub - 1) // sub) * sub)
    grid = (pl.cdiv(R, row_tile),)

    out = pl.pallas_call(
        _tanh_kernel,
        out_shape=jax.ShapeDtypeStruct((R, C), dtype),
        grid_spec=pltpu.PrefetchScalarGridSpec(
            num_scalar_prefetch=0,
            grid=grid,
            in_specs=[pl.BlockSpec((row_tile, C), lambda i: (i, 0))],
            out_specs=pl.BlockSpec((row_tile, C), lambda i: (i, 0)),
        ),
        compiler_params=pltpu.CompilerParams(
            dimension_semantics=("parallel",),
            # 2-deep double buffering of in + out at ~4 MiB blocks ~= 16 MiB.
            vmem_limit_bytes=32 * 1024 * 1024,
        ),
    )(x2)

    if padded:
        return out.reshape(-1)[:N].reshape(orig_shape)
    return out.reshape(orig_shape)


def _reference(x):
    return jnp.tanh(x)


if __name__ == "__main__":
    key = jax.random.PRNGKey(0)
    k1, k2, k3 = jax.random.split(key, 3)

    # Small example consistent with the module: batch=2, seq=8, hidden=32.
    # N = 512 -> zero-copy fast path (C = 512, partial 8-row block).
    x = jax.random.normal(k1, (2, 8, 32), dtype=jnp.float32)
    out = jax.block_until_ready(simple_tanh(x))
    assert out.shape == x.shape and out.dtype == x.dtype
    assert jnp.allclose(out, _reference(x), atol=1e-6, rtol=1e-6)

    # Ragged shape exercising the (minimal) pad/slice fallback path.
    y = jax.random.normal(k2, (3, 5, 7), dtype=jnp.float32)
    out_y = jax.block_until_ready(simple_tanh(y))
    assert out_y.shape == y.shape and out_y.dtype == y.dtype
    assert jnp.allclose(out_y, _reference(y), atol=1e-6, rtol=1e-6)

    # bf16 input exercising the native-dtype tanh and 16-row sublane alignment.
    z = jax.random.normal(k3, (4, 16, 256), dtype=jnp.bfloat16)
    out_z = jax.block_until_ready(simple_tanh(z))
    assert out_z.shape == z.shape and out_z.dtype == z.dtype
    assert jnp.allclose(out_z.astype(jnp.float32),
                        _reference(z.astype(jnp.float32)), atol=2e-2, rtol=2e-2)

    print("KERNEL_OK")
</pallas_src>

<mosaic_0001>
module attributes {stable_mosaic.version = 11 : i64} {
  func.func @_tanh_kernel(%arg0: i32, %arg1: memref<8x512xf32, #tpu.memory_space<vmem>>, %arg2: memref<8x512xf32, #tpu.memory_space<vmem>>) attributes {dimension_semantics = [#tpu.dimension_semantics<parallel>], iteration_bounds = array<i64: 1>, scalar_prefetch = 0 : i64, scratch_operands = 0 : i64, tpu.core_type = #tpu.core_type<tc>, window_params = [{transform_indices = @transform_0, window_bounds = array<i64: 8, 512>}, {transform_indices = @transform_1, window_bounds = array<i64: 8, 512>}]} {
    %c0 = arith.constant 0 : index
    %c0_0 = arith.constant 0 : index
    %0 = vector.load %arg1[%c0, %c0_0] : memref<8x512xf32, #tpu.memory_space<vmem>>, vector<8x512xf32>
    %1 = math.tanh %0 : vector<8x512xf32>
    %c0_1 = arith.constant 0 : index
    %c0_2 = arith.constant 0 : index
    %2 = vector.load %arg2[%c0_1, %c0_2] : memref<8x512xf32, #tpu.memory_space<vmem>>, vector<8x512xf32>
    tpu.vector_store %arg2[%c0_1, %c0_2], %1 {strides = array<i32>} : memref<8x512xf32, #tpu.memory_space<vmem>>, vector<8x512xf32>,
    return
  }
  func.func @transform_0(%arg0: i32) -> (i32, i32) {
    %c0_i32 = arith.constant 0 : i32
    %c0_i32_0 = arith.constant 0 : i32
    return %arg0, %c0_i32 : i32, i32
  }
  func.func @transform_1(%arg0: i32) -> (i32, i32) {
    %c0_i32 = arith.constant 0 : i32
    %c0_i32_0 = arith.constant 0 : i32
    return %arg0, %c0_i32 : i32, i32
  }
}

</mosaic_0001>

<llo_original>
// kernel: tpu_custom_call.1
$region0: #{tpu_custom_call.1}
  #allocation0 [shape = 'u32[]', space=smem, size = 0x4, offset = 0x4, fixed_abs, tag = 'smem constant byte address 0x4 - core index']
  #allocation1 [shape = 'u32[72,128]{1,0:T(1,128)}', space=vmem, size = 0x9000, scoped, tag = 'internal scratch']
  %s0 = inlined_call_operand.hbm [shape: f32[1,512], index: 0, kind: input, shape index: {}]
  %s1 = inlined_call_operand.hbm [shape: f32[1,512], index: 1, kind: output, shape index: {}]
  %s2 = sld [smem:[#allocation0]]
  $region18: #{tpu_custom_call.1} parent=0
    _
  %s4 = ssub.s32 1, %s2
  %s5 = scalar_select 0, %s4, %s2
  $region1: #{tpu_custom_call.1} parent=0
    #allocation2 [shape = 'u8[16384]{0}', space=vmem, size = 0x4000, scoped, tag = 'input window, operand 0, single buffered']
    #allocation3 [shape = 's32[1]{0}', space=sflag, size = 0x4, scoped, tag = 'scoped memory for tpu_custom_call.1']
    #allocation4 [shape = 's32[1]{0}', space=sflag, size = 0x4, scoped, tag = 'scoped memory for tpu_custom_call.1']
    #allocation5 [shape = 'u8[16384]{0}', space=vmem, size = 0x4000, scoped, tag = 'output window, operand 0, single buffered']
    %6 = vsyncpa [#allocation3], 0
    %7 = vsyncpa [#allocation4], 0
    // Predicated region
    $region2: #{tpu_custom_call.1} parent=1 // pred_check
      _
    $region3: #{tpu_custom_call.1} parent=1 // pred_check_branch
      %9 = sbr.rel (0) target = $region5
    $region4: #{tpu_custom_call.1} parent=1 // pred_region
      %11 = vsyncadd [#allocation3], 448
      %s12 = sshll.u32 %s0, 4
      %s13 = int_to_ptr.hbm [resolvable:$true] %s12
      %s14 = sshll.u32 [#allocation2], 4
      %s15 = int_to_ptr.vmem [resolvable:$true] %s14
      %20 = dma.hbm_to_vmem [thread:$0]  %s13, 64, %s15, [#allocation3], 64, 64, 4
    $region5: #{tpu_custom_call.1} parent=1 // pred_fallthru
      _
    // Predicated region
    $region6: #{tpu_custom_call.1} parent=1 // pred_check
      _
    $region7: #{tpu_custom_call.1} parent=1 // pred_check_branch
      %22 = sbr.rel (0) target = $region9
    $region8: #{tpu_custom_call.1} parent=1 // pred_region
      %24 = dma.done [#allocation3], 512
    $region9: #{tpu_custom_call.1} parent=1 // pred_fallthru
      _
    %v25 = vld [vmem:[#allocation2] sm:$0xf]
    %v26 = vld [vmem:[#allocation2 + $0x4] sm:$0xf]
    %v27 = vld [vmem:[#allocation2 + $0x8] sm:$0xf]
    %v28 = vld [vmem:[#allocation2 + $0xc] sm:$0xf]
    %v29 = vld [vmem:[#allocation2 + $0x10] sm:$0xf]
    %v30 = vld [vmem:[#allocation2 + $0x14] sm:$0xf]
    %v31 = vld [vmem:[#allocation2 + $0x18] sm:$0xf]
    %v32 = vld [vmem:[#allocation2 + $0x1c] sm:$0xf]
    %v33 = vtanh.pop %v25
    %v34 = vtanh.pop %v26
    %v35 = vtanh.pop %v27
    %v36 = vtanh.pop %v28
    %v37 = vtanh.pop %v29
    %v38 = vtanh.pop %v30
    %v39 = vtanh.pop %v31
    %v40 = vtanh.pop %v32
    %v41 = vlaneseq
    %vm42 = vcmp.ge.s32.totalorder %v41, 0
    %vm43 = vcmp.lt.s32.totalorder %v41, 512
    %vm44 = vmand %vm42, %vm43
    %45 = vst.msk [vmem:[#allocation5] sm:$0xf] %vm44, %v33
    %46 = vst.msk [vmem:[#allocation5 + $0x4] sm:$0xf] %vm44, %v34
    %47 = vst.msk [vmem:[#allocation5 + $0x8] sm:$0xf] %vm44, %v35
    %48 = vst.msk [vmem:[#allocation5 + $0xc] sm:$0xf] %vm44, %v36
    %49 = vst.msk [vmem:[#allocation5 + $0x10] sm:$0xf] %vm44, %v37
    %50 = vst.msk [vmem:[#allocation5 + $0x14] sm:$0xf] %vm44, %v38
    %51 = vst.msk [vmem:[#allocation5 + $0x18] sm:$0xf] %vm44, %v39
    %52 = vst.msk [vmem:[#allocation5 + $0x1c] sm:$0xf] %vm44, %v40
    // Predicated region
    $region10: #{tpu_custom_call.1} parent=1 // pred_check
      _
    $region11: #{tpu_custom_call.1} parent=1 // pred_check_branch
      %54 = sbr.rel (0) target = $region13
    $region12: #{tpu_custom_call.1} parent=1 // pred_region
      %56 = vsyncadd [#allocation4], 448
      %s57 = sshll.u32 [#allocation5], 4
      %s58 = int_to_ptr.vmem [resolvable:$true] %s57
      %s59 = sshll.u32 %s1, 4
      %s60 = int_to_ptr.hbm [resolvable:$true] %s59
      %65 = dma.vmem_to_hbm [thread:$0]  %s58, 64, %s60, [#allocation4], 64, 64, 4
    $region13: #{tpu_custom_call.1} parent=1 // pred_fallthru
      _
    // Predicated region
    $region14: #{tpu_custom_call.1} parent=1 // pred_check
      _
    $region15: #{tpu_custom_call.1} parent=1 // pred_check_branch
      %67 = sbr.rel (0) target = $region17
    $region16: #{tpu_custom_call.1} parent=1 // pred_region
      %69 = dma.done [#allocation4], 512
    $region17: #{tpu_custom_call.1} parent=1 // pred_fallthru
      _
    %70 = vsyncpa [#allocation3], 1
    %71 = vsyncpa [#allocation4], 1

</llo_original>
